<compile_context>
chip_gen: v6e
topology: v6e:2x2x1
jax: 0.10.0
libtpu: 0.0.40
codegen_flags: <defaults>
</compile_context>

<pallas_src>
import jax
import jax.numpy as jnp
from jax import lax
from jax.experimental import pallas as pl
from jax.experimental.pallas import tpu as pltpu

NUM_INPUT = 38
H1 = 30
H2 = 20
OUT = 1

_LANE = 128
# Rough VMEM cost per batch row (everything lane-pads 38/30/20 -> 128 f32):
# 2 x-buffers (double buffering) + h1 + h2 + one slack temp ~= 2.5 KiB / row.
_VMEM_BYTES_PER_ROW = 5 * _LANE * 4


def _round_up(n: int, m: int) -> int:
    return ((n + m - 1) // m) * m


def _vmem_budget_bytes() -> int:
    """Per-generation VMEM budget with headroom for compiler scratch."""
    try:
        cap = pltpu.get_tpu_info().vmem_capacity_bytes
    except Exception:
        cap = 64 << 20  # conservative fallback: v7x per-TensorCore VMEM
    return int(min(cap * 3 // 4, 100 << 20))


def _pick_tile_rows(B: int, block_rows: int, vmem_budget: int) -> int:
    """Batch tile: multiple of 128 (lane-dense output), capped by VMEM budget,
    and split into >= 2 tiles when possible so both v7x TensorCores work."""
    tm_cap = max(_LANE, (vmem_budget // _VMEM_BYTES_PER_ROW) // _LANE * _LANE)
    if B <= _LANE:
        tm = _LANE
    elif B <= block_rows:
        tm = _round_up(pl.cdiv(B, 2), _LANE)   # >= 2 tiles (harmless on 1-TC chips)
    else:
        tm = _round_up(min(block_rows, B), _LANE)
    return min(tm, tm_cap)


def _mlp_kernel(x_ref, w1_ref, b1_ref, w2_ref, b2_ref, w3_ref, b3_ref, o_ref):
    x = x_ref[...].astype(jnp.float32)                              # [TM, 38]

    # fc1 + ReLU (MXU)
    h = jnp.dot(x, w1_ref[...], preferred_element_type=jnp.float32) + b1_ref[...]
    h = jnp.maximum(h, 0.0)                                         # [TM, 30]

    # fc2 + ReLU (MXU)
    h = jnp.dot(h, w2_ref[...], preferred_element_type=jnp.float32) + b2_ref[...]
    h = jnp.maximum(h, 0.0)                                         # [TM, 20]

    # fc3 "transposed": contract w3 [1, 20] (torch layout) against h [TM, 20]
    # -> [1, TM]; batch maps to lanes -> unmasked full-width output store.
    z = lax.dot_general(
        w3_ref[...], h,
        dimension_numbers=(((1,), (1,)), ((), ())),
        preferred_element_type=jnp.float32,
    ) + b3_ref[...]                                                 # [1, TM]

    # Numerically-stable sigmoid: exp(-|z|) never overflows (EUP op).
    e = jnp.exp(-jnp.abs(z))
    o_ref[...] = jnp.where(z >= 0.0, 1.0 / (1.0 + e), e / (1.0 + e))


def net_forward(x, params, *, block_rows: int = 8192, input_dtype=None):
    """x: [B, NUM_INPUT] float32 -> [B, 1] float32."""
    w1, b1, w2, b2, w3, b3 = params
    B = x.shape[0]
    if input_dtype is not None:
        # Optional bandwidth saver (e.g. jnp.bfloat16); breaks strict f32 parity.
        x = x.astype(input_dtype)

    vmem_budget = _vmem_budget_bytes()
    tm = _pick_tile_rows(B, block_rows, vmem_budget)
    num_tiles = pl.cdiv(B, tm)
    b_pad = num_tiles * tm

    if B < tm:
        # Tiny batch (< one 128-row tile): pad so the single block is fully
        # in-bounds — a negligible (< 128-row) copy. For large B there is NO
        # pad copy: the last tile's read DMA is clipped by Pallas, the extra
        # lanes compute on garbage (no cross-row mixing anywhere), and the
        # wrapper slice below drops them. Output stores are always in-bounds
        # because the output is allocated at b_pad.
        x = jnp.pad(x, ((0, tm - B), (0, 0)))

    const2 = lambda i: (0, 0)  # weights/biases: same block every step -> VMEM-resident

    out = pl.pallas_call(
        _mlp_kernel,
        out_shape=jax.ShapeDtypeStruct((1, b_pad), jnp.float32),
        grid=(num_tiles,),
        in_specs=[
            pl.BlockSpec((tm, NUM_INPUT), lambda i: (i, 0)),   # x tile
            pl.BlockSpec((NUM_INPUT, H1), const2),             # w1 [38, 30]
            pl.BlockSpec((1, H1), const2),                     # b1 [1, 30]
            pl.BlockSpec((H1, H2), const2),                    # w2 [30, 20]
            pl.BlockSpec((1, H2), const2),                     # b2 [1, 20]
            pl.BlockSpec((OUT, H2), const2),                   # w3 [1, 20] (torch layout)
            pl.BlockSpec((1, OUT), const2),                    # b3 [1, 1]
        ],
        out_specs=pl.BlockSpec((1, tm), lambda i: (0, i)),     # lane-dense row
        compiler_params=pltpu.CompilerParams(
            dimension_semantics=("parallel",),
            vmem_limit_bytes=vmem_budget,
        ),
    )(x, w1, b1, w2, b2, w3, b3)

    # out[0, i*tm + t] corresponds to batch row i*tm + t.
    return out[0, :B].reshape(B, OUT)


def init_params(key):
    """Deterministic init mimicking torch.nn.Linear defaults:
    uniform(-1/sqrt(fan_in), 1/sqrt(fan_in)) for both weight and bias."""
    def linear(k, fan_in, fan_out, *, torch_layout=False):
        kw, kb = jax.random.split(k)
        bound = 1.0 / jnp.sqrt(jnp.float32(fan_in))
        shape = (fan_out, fan_in) if torch_layout else (fan_in, fan_out)
        w = jax.random.uniform(kw, shape, jnp.float32, -bound, bound)
        b = jax.random.uniform(kb, (1, fan_out), jnp.float32, -bound, bound)
        return w, b

    k1, k2, k3 = jax.random.split(key, 3)
    w1, b1 = linear(k1, NUM_INPUT, H1)                       # [38, 30], [1, 30]
    w2, b2 = linear(k2, H1, H2)                              # [30, 20], [1, 20]
    w3, b3 = linear(k3, H2, OUT, torch_layout=True)          # [1, 20],  [1, 1]
    return (w1, b1, w2, b2, w3, b3)


def _reference_forward(x, params):
    w1, b1, w2, b2, w3, b3 = params
    h = jnp.maximum(x @ w1 + b1, 0.0)
    h = jnp.maximum(h @ w2 + b2, 0.0)
    z = h @ w3.T + b3
    return jax.nn.sigmoid(z)


if __name__ == "__main__":
    key = jax.random.PRNGKey(0)
    kx, kp = jax.random.split(key)
    params = init_params(kp)

    # Small single-tile batch (exercises the tiny-pad path).
    B = 8
    x = jax.random.normal(kx, (B, NUM_INPUT), jnp.float32)
    out = jax.block_until_ready(net_forward(x, params))
    ref = _reference_forward(x, params)
    assert out.shape == (B, OUT), out.shape
    assert jnp.allclose(out, ref, atol=1e-5, rtol=1e-5), "mismatch vs reference (B=8)"

    # Medium batch: auto-split into 2 tiles (both v7x TCs), ragged last tile
    # read with NO pad copy.
    B2 = 300
    x2 = jax.random.normal(kx, (B2, NUM_INPUT), jnp.float32)
    out2 = jax.block_until_ready(net_forward(x2, params))
    ref2 = _reference_forward(x2, params)
    assert out2.shape == (B2, OUT), out2.shape
    assert jnp.allclose(out2, ref2, atol=1e-5, rtol=1e-5), "mismatch vs reference (B=300)"

    # Forced small tile: grid of 3 steps, pad-free ragged tail.
    out3 = jax.block_until_ready(net_forward(x2, params, block_rows=128))
    assert jnp.allclose(out3, ref2, atol=1e-5, rtol=1e-5), "mismatch vs reference (tiled)"

    print("KERNEL_OK")
</pallas_src>

<mosaic_0001>
module attributes {stable_mosaic.version = 11 : i64} {
  func.func @_mlp_kernel(%arg0: i32, %arg1: memref<128x38xf32, #tpu.memory_space<vmem>>, %arg2: memref<38x30xf32, #tpu.memory_space<vmem>>, %arg3: memref<1x30xf32, #tpu.memory_space<vmem>>, %arg4: memref<30x20xf32, #tpu.memory_space<vmem>>, %arg5: memref<1x20xf32, #tpu.memory_space<vmem>>, %arg6: memref<1x20xf32, #tpu.memory_space<vmem>>, %arg7: memref<1x1xf32, #tpu.memory_space<vmem>>, %arg8: memref<1x128xf32, #tpu.memory_space<vmem>>) attributes {dimension_semantics = [#tpu.dimension_semantics<parallel>], iteration_bounds = array<i64: 1>, scalar_prefetch = 0 : i64, scratch_operands = 0 : i64, tpu.core_type = #tpu.core_type<tc>, window_params = [{transform_indices = @transform_0, window_bounds = array<i64: 128, 38>}, {pipeline_mode = #tpu.pipeline_mode<synchronous>, transform_indices = @transform_1, window_bounds = array<i64: 38, 30>}, {pipeline_mode = #tpu.pipeline_mode<synchronous>, transform_indices = @transform_2, window_bounds = array<i64: 1, 30>}, {pipeline_mode = #tpu.pipeline_mode<synchronous>, transform_indices = @transform_3, window_bounds = array<i64: 30, 20>}, {pipeline_mode = #tpu.pipeline_mode<synchronous>, transform_indices = @transform_4, window_bounds = array<i64: 1, 20>}, {pipeline_mode = #tpu.pipeline_mode<synchronous>, transform_indices = @transform_5, window_bounds = array<i64: 1, 20>}, {pipeline_mode = #tpu.pipeline_mode<synchronous>, transform_indices = @transform_6, window_bounds = array<i64: 1, 1>}, {transform_indices = @transform_7, window_bounds = array<i64: 1, 128>}]} {
    %c0 = arith.constant 0 : index
    %c0_0 = arith.constant 0 : index
    %0 = vector.load %arg1[%c0, %c0_0] : memref<128x38xf32, #tpu.memory_space<vmem>>, vector<128x38xf32>
    %c0_1 = arith.constant 0 : index
    %c0_2 = arith.constant 0 : index
    %1 = vector.load %arg2[%c0_1, %c0_2] : memref<38x30xf32, #tpu.memory_space<vmem>>, vector<38x30xf32>
    %cst = arith.constant dense<0.000000e+00> : vector<128x30xf32>
    %2 = tpu.matmul %0, %1, %cst {dimension_numbers = #tpu.dot_dimension_numbers<[1], [0], [0], [1], [0, 0, 1, 1], [], []>} : vector<128x38xf32>, vector<38x30xf32>, vector<128x30xf32> -> vector<128x30xf32>
    %c0_3 = arith.constant 0 : index
    %c0_4 = arith.constant 0 : index
    %3 = vector.load %arg3[%c0_3, %c0_4] : memref<1x30xf32, #tpu.memory_space<vmem>>, vector<1x30xf32>
    %4 = vector.broadcast %3 : vector<1x30xf32> to vector<128x30xf32>
    %5 = arith.addf %2, %4 : vector<128x30xf32>
    %cst_5 = arith.constant 0.000000e+00 : f32
    %6 = vector.broadcast %cst_5 : f32 to vector<128x30xf32>
    %7 = arith.maximumf %5, %6 : vector<128x30xf32>
    %c0_6 = arith.constant 0 : index
    %c0_7 = arith.constant 0 : index
    %8 = vector.load %arg4[%c0_6, %c0_7] : memref<30x20xf32, #tpu.memory_space<vmem>>, vector<30x20xf32>
    %cst_8 = arith.constant dense<0.000000e+00> : vector<128x20xf32>
    %9 = tpu.matmul %7, %8, %cst_8 {dimension_numbers = #tpu.dot_dimension_numbers<[1], [0], [0], [1], [0, 0, 1, 1], [], []>} : vector<128x30xf32>, vector<30x20xf32>, vector<128x20xf32> -> vector<128x20xf32>
    %c0_9 = arith.constant 0 : index
    %c0_10 = arith.constant 0 : index
    %10 = vector.load %arg5[%c0_9, %c0_10] : memref<1x20xf32, #tpu.memory_space<vmem>>, vector<1x20xf32>
    %11 = vector.broadcast %10 : vector<1x20xf32> to vector<128x20xf32>
    %12 = arith.addf %9, %11 : vector<128x20xf32>
    %cst_11 = arith.constant 0.000000e+00 : f32
    %13 = vector.broadcast %cst_11 : f32 to vector<128x20xf32>
    %14 = arith.maximumf %12, %13 : vector<128x20xf32>
    %c0_12 = arith.constant 0 : index
    %c0_13 = arith.constant 0 : index
    %15 = vector.load %arg6[%c0_12, %c0_13] : memref<1x20xf32, #tpu.memory_space<vmem>>, vector<1x20xf32>
    %cst_14 = arith.constant dense<0.000000e+00> : vector<1x128xf32>
    %16 = tpu.matmul %15, %14, %cst_14 {dimension_numbers = #tpu.dot_dimension_numbers<[1], [1], [0], [0], [0, 0, 1, 0], [], []>} : vector<1x20xf32>, vector<128x20xf32>, vector<1x128xf32> -> vector<1x128xf32>
    %c0_15 = arith.constant 0 : index
    %c0_16 = arith.constant 0 : index
    %17 = vector.load %arg7[%c0_15, %c0_16] : memref<1x1xf32, #tpu.memory_space<vmem>>, vector<1x1xf32>
    %18 = vector.broadcast %17 : vector<1x1xf32> to vector<1x128xf32>
    %19 = arith.addf %16, %18 : vector<1x128xf32>
    %20 = math.absf %19 : vector<1x128xf32>
    %cst_17 = arith.constant 0.000000e+00 : f32
    %21 = vector.broadcast %cst_17 : f32 to vector<1x128xf32>
    %22 = arith.subf %21, %20 : vector<1x128xf32>
    %23 = math.exp %22 : vector<1x128xf32>
    %cst_18 = arith.constant 0.000000e+00 : f32
    %24 = vector.broadcast %cst_18 : f32 to vector<1x128xf32>
    %25 = arith.cmpf oge, %19, %24 : vector<1x128xf32>
    %cst_19 = arith.constant 1.000000e+00 : f32
    %26 = vector.broadcast %cst_19 : f32 to vector<1x128xf32>
    %27 = arith.addf %26, %23 : vector<1x128xf32>
    %cst_20 = arith.constant 1.000000e+00 : f32
    %28 = vector.broadcast %cst_20 : f32 to vector<1x128xf32>
    %29 = arith.divf %28, %27 : vector<1x128xf32>
    %cst_21 = arith.constant 1.000000e+00 : f32
    %30 = vector.broadcast %cst_21 : f32 to vector<1x128xf32>
    %31 = arith.addf %30, %23 : vector<1x128xf32>
    %32 = arith.divf %23, %31 : vector<1x128xf32>
    %33 = arith.select %25, %29, %32 : vector<1x128xi1>, vector<1x128xf32>
    %c0_22 = arith.constant 0 : index
    %c0_23 = arith.constant 0 : index
    %34 = vector.load %arg8[%c0_22, %c0_23] : memref<1x128xf32, #tpu.memory_space<vmem>>, vector<1x128xf32>
    tpu.vector_store %arg8[%c0_22, %c0_23], %33 {strides = array<i32>} : memref<1x128xf32, #tpu.memory_space<vmem>>, vector<1x128xf32>,
    return
  }
  func.func @transform_0(%arg0: i32) -> (i32, i32) {
    %c0_i32 = arith.constant 0 : i32
    %c0_i32_0 = arith.constant 0 : i32
    return %arg0, %c0_i32 : i32, i32
  }
  func.func @transform_1(%arg0: i32) -> (i32, i32) {
    %c0_i32 = arith.constant 0 : i32
    %c0_i32_0 = arith.constant 0 : i32
    %c0_i32_1 = arith.constant 0 : i32
    return %c0_i32, %c0_i32_0 : i32, i32
  }
  func.func @transform_2(%arg0: i32) -> (i32, i32) {
    %c0_i32 = arith.constant 0 : i32
    %c0_i32_0 = arith.constant 0 : i32
    %c0_i32_1 = arith.constant 0 : i32
    return %c0_i32, %c0_i32_0 : i32, i32
  }
  func.func @transform_3(%arg0: i32) -> (i32, i32) {
    %c0_i32 = arith.constant 0 : i32
    %c0_i32_0 = arith.constant 0 : i32
    %c0_i32_1 = arith.constant 0 : i32
    return %c0_i32, %c0_i32_0 : i32, i32
  }
  func.func @transform_4(%arg0: i32) -> (i32, i32) {
    %c0_i32 = arith.constant 0 : i32
    %c0_i32_0 = arith.constant 0 : i32
    %c0_i32_1 = arith.constant 0 : i32
    return %c0_i32, %c0_i32_0 : i32, i32
  }
  func.func @transform_5(%arg0: i32) -> (i32, i32) {
    %c0_i32 = arith.constant 0 : i32
    %c0_i32_0 = arith.constant 0 : i32
    %c0_i32_1 = arith.constant 0 : i32
    return %c0_i32, %c0_i32_0 : i32, i32
  }
  func.func @transform_6(%arg0: i32) -> (i32, i32) {
    %c0_i32 = arith.constant 0 : i32
    %c0_i32_0 = arith.constant 0 : i32
    %c0_i32_1 = arith.constant 0 : i32
    return %c0_i32, %c0_i32_0 : i32, i32
  }
  func.func @transform_7(%arg0: i32) -> (i32, i32) {
    %c0_i32 = arith.constant 0 : i32
    %c0_i32_0 = arith.constant 0 : i32
    return %c0_i32, %arg0 : i32, i32
  }
}

</mosaic_0001>

<llo_original>
// kernel: tpu_custom_call.1
$region0: #{tpu_custom_call.1}
  #allocation0 [shape = 'u32[]', space=smem, size = 0x4, offset = 0x4, fixed_abs, tag = 'smem constant byte address 0x4 - core index']
  #allocation1 [shape = 'u32[144,128]{1,0:T(1,128)}', space=vmem, size = 0x12000, scoped, tag = 'internal scratch']
  #allocation2 [shape = 'f32[1,1]{1,0:T(1,128)S(1)}', space=vmem, size = 0x200, scoped, tag = 'scoped memory for tpu_custom_call.1']
  %s0 = inlined_call_operand.vmem [shape: f32[128,38], index: 0, kind: input, shape index: {}]
  %s1 = inlined_call_operand.vmem [shape: f32[38,30], index: 1, kind: input, shape index: {}]
  %s2 = inlined_call_operand.vmem [shape: f32[1,30], index: 2, kind: input, shape index: {}]
  %s3 = inlined_call_operand.vmem [shape: f32[30,20], index: 3, kind: input, shape index: {}]
  %s4 = inlined_call_operand.vmem [shape: f32[1,20], index: 4, kind: input, shape index: {}]
  %s5 = inlined_call_operand.vmem [shape: f32[1,20], index: 5, kind: input, shape index: {}]
  %s6 = inlined_call_operand.<no memory space> [shape: f32[1,1], index: 6, kind: input, shape index: {}]
  %s7 = inlined_call_operand.hbm [shape: f32[1,128], index: 7, kind: output, shape index: {}]
  %s8 = sld [smem:[#allocation0]]
  $region38: #{tpu_custom_call.1} parent=0
    _
  %s10 = ssub.s32 1, %s8
  %s11 = scalar_select 0, %s10, %s8
  %v12 = vstv %s6
  %13 = vst [vmem:[#allocation2] sm:$0x1] %v12
  $region1: #{tpu_custom_call.1} parent=0
    #allocation3 [shape = 'u8[512]{0}', space=vmem, size = 0x400, scoped, tag = 'output window, operand 0, single buffered']
    #allocation4 [shape = 's32[1]{0}', space=sflag, size = 0x4, scoped, tag = 'scoped memory for tpu_custom_call.1']
    %14 = vsyncpa [#allocation4], 0
    // Predicated region
    $region2: #{tpu_custom_call.1} parent=1 // pred_check
      _
    $region3: #{tpu_custom_call.1} parent=1 // pred_check_branch
      %16 = sbr.rel (0) target = $region5
    $region4: #{tpu_custom_call.1} parent=1 // pred_region
      _
    $region5: #{tpu_custom_call.1} parent=1 // pred_fallthru
      _
    // Predicated region
    $region6: #{tpu_custom_call.1} parent=1 // pred_check
      _
    $region7: #{tpu_custom_call.1} parent=1 // pred_check_branch
      %18 = sbr.rel (0) target = $region9
    $region8: #{tpu_custom_call.1} parent=1 // pred_region
      _
    $region9: #{tpu_custom_call.1} parent=1 // pred_fallthru
      _
    // Predicated region
    $region10: #{tpu_custom_call.1} parent=1 // pred_check
      _
    $region11: #{tpu_custom_call.1} parent=1 // pred_check_branch
      %20 = sbr.rel (0) target = $region13
    $region12: #{tpu_custom_call.1} parent=1 // pred_region
      _
    $region13: #{tpu_custom_call.1} parent=1 // pred_fallthru
      _
    // Predicated region
    $region14: #{tpu_custom_call.1} parent=1 // pred_check
      _
    $region15: #{tpu_custom_call.1} parent=1 // pred_check_branch
      %22 = sbr.rel (0) target = $region17
    $region16: #{tpu_custom_call.1} parent=1 // pred_region
      _
    $region17: #{tpu_custom_call.1} parent=1 // pred_fallthru
      _
    // Predicated region
    $region18: #{tpu_custom_call.1} parent=1 // pred_check
      _
    $region19: #{tpu_custom_call.1} parent=1 // pred_check_branch
      %24 = sbr.rel (0) target = $region21
    $region20: #{tpu_custom_call.1} parent=1 // pred_region
      _
    $region21: #{tpu_custom_call.1} parent=1 // pred_fallthru
      _
    // Predicated region
    $region22: #{tpu_custom_call.1} parent=1 // pred_check
      _
    $region23: #{tpu_custom_call.1} parent=1 // pred_check_branch
      %26 = sbr.rel (0) target = $region25
    $region24: #{tpu_custom_call.1} parent=1 // pred_region
      _
    $region25: #{tpu_custom_call.1} parent=1 // pred_fallthru
      _
    // Predicated region
    $region26: #{tpu_custom_call.1} parent=1 // pred_check
      _
    $region27: #{tpu_custom_call.1} parent=1 // pred_check_branch
      %28 = sbr.rel (0) target = $region29
    $region28: #{tpu_custom_call.1} parent=1 // pred_region
      _
    $region29: #{tpu_custom_call.1} parent=1 // pred_fallthru
      _
    %v29 = vld [vmem:[%s0] sm:$0xff]
    %v30 = vld [vmem:[%s0 + $0x8] sm:$0xff]
    %v31 = vld [vmem:[%s0 + $0x10] sm:$0xff]
    %v32 = vld [vmem:[%s0 + $0x18] sm:$0xff]
    %v33 = vld [vmem:[%s0 + $0x20] sm:$0xff]
    %v34 = vld [vmem:[%s0 + $0x28] sm:$0xff]
    %v35 = vld [vmem:[%s0 + $0x30] sm:$0xff]
    %v36 = vld [vmem:[%s0 + $0x38] sm:$0xff]
    %v37 = vld [vmem:[%s0 + $0x40] sm:$0xff]
    %v38 = vld [vmem:[%s0 + $0x48] sm:$0xff]
    %v39 = vld [vmem:[%s0 + $0x50] sm:$0xff]
    %v40 = vld [vmem:[%s0 + $0x58] sm:$0xff]
    %v41 = vld [vmem:[%s0 + $0x60] sm:$0xff]
    %v42 = vld [vmem:[%s0 + $0x68] sm:$0xff]
    %v43 = vld [vmem:[%s0 + $0x70] sm:$0xff]
    %v44 = vld [vmem:[%s0 + $0x78] sm:$0xff]
    %v45 = vld [vmem:[%s1] sm:$0xff]
    %v46 = vld [vmem:[%s1 + $0x8] sm:$0xff]
    %v47 = vld [vmem:[%s1 + $0x10] sm:$0xff]
    %v48 = vld [vmem:[%s1 + $0x18] sm:$0xff]
    %v49 = vld [vmem:[%s1 + $0x20] sm:$0x3f]
    %v50 = vld [vmem:[%s2] sm:$0x1]
    %v52 = vlaneseq
    %v53 = vshrl.u32 %v52, 7
    %v54 = vsub.s32 0, %v53
    %v55 = vrot.slane %v50, %v54
    %vm57 = vcmask 310272
    %v59 = vsel %vm57, %v29, 0
    %v62 = vsel %vm57, %v30, 0
    %v65 = vsel %vm57, %v31, 0
    %v68 = vsel %vm57, %v32, 0
    %v71 = vsel %vm57, %v33, 0
    %v74 = vsel %vm57, %v34, 0
    %v77 = vsel %vm57, %v35, 0
    %v80 = vsel %vm57, %v36, 0
    %v83 = vsel %vm57, %v37, 0
    %v86 = vsel %vm57, %v38, 0
    %v89 = vsel %vm57, %v39, 0
    %v92 = vsel %vm57, %v40, 0
    %v95 = vsel %vm57, %v41, 0
    %v98 = vsel %vm57, %v42, 0
    %v101 = vsel %vm57, %v43, 0
    %v104 = vsel %vm57, %v44, 0
    %vm106 = vcmask 1045504
    %v108 = vsel %vm106, %v49, 0
    %110 = vmatprep.subr.mxu0 0.0
    %111 = vmatpush1.msra.mxu0 0.0
    %112 = vmatprep.subr.mxu0 0.0
    %113 = vmatpush1.msra.mxu0 0.0
    %114 = vmatprep.subr.mxu0 0.0
    %115 = vmatpush1.msra.mxu0 0.0
    %116 = vmatprep.subr.mxu0 0.0
    %117 = vmatpush1.msra.mxu0 0.0
    %118 = vmatprep.subr.mxu0 0.0
    %119 = vmatpush1.msra.mxu0 0.0
    %120 = vmatprep.subr.mxu0 0.0
    %121 = vmatpush1.msra.mxu0 0.0
    %122 = vmatprep.subr.mxu0 0.0
    %123 = vmatpush1.msra.mxu0 0.0
    %124 = vmatprep.subr.mxu0 0.0
    %125 = vmatpush1.msra.mxu0 0.0
    %126 = vmatprep.subr.mxu0 0.0
    %127 = vmatpush1.msra.mxu0 0.0
    %128 = vmatprep.subr.mxu0 0.0
    %129 = vmatpush1.msra.mxu0 0.0
    %130 = vmatprep.subr.mxu0 0.0
    %131 = vmatpush1.msra.mxu0 0.0
    %132 = vmatprep.subr.mxu0 0.0
    %133 = vmatpush1.msra.mxu0 %v108
    %134 = vmatprep.subr.mxu0 0.0
    %135 = vmatpush1.msra.mxu0 %v48
    %136 = vmatprep.subr.mxu0 0.0
    %137 = vmatpush1.msra.mxu0 %v47
    %138 = vmatprep.subr.mxu0 0.0
    %139 = vmatpush1.msra.mxu0 %v46
    %140 = vmatprep.subr.mxu0 0.0
    %141 = vmatpush1.msra.mxu0 %v45
    %142 = vmatprep.subr.mxu0 0.0
    %143 = vmatpush2.msra.mxu0 0.0
    %144 = vmatprep.subr.mxu0 0.0
    %145 = vmatpush2.msra.mxu0 0.0
    %146 = vmatprep.subr.mxu0 0.0
    %147 = vmatpush2.msra.mxu0 0.0
    %148 = vmatprep.subr.mxu0 0.0
    %149 = vmatpush2.msra.mxu0 0.0
    %150 = vmatprep.subr.mxu0 0.0
    %151 = vmatpush2.msra.mxu0 0.0
    %152 = vmatprep.subr.mxu0 0.0
    %153 = vmatpush2.msra.mxu0 0.0
    %154 = vmatprep.subr.mxu0 0.0
    %155 = vmatpush2.msra.mxu0 0.0
    %156 = vmatprep.subr.mxu0 0.0
    %157 = vmatpush2.msra.mxu0 0.0
    %158 = vmatprep.subr.mxu0 0.0
    %159 = vmatpush2.msra.mxu0 0.0
    %160 = vmatprep.subr.mxu0 0.0
    %161 = vmatpush2.msra.mxu0 0.0
    %162 = vmatprep.subr.mxu0 0.0
    %163 = vmatpush2.msra.mxu0 0.0
    %164 = vmatprep.subr.mxu0 0.0
    %165 = vmatpush2.msra.mxu0 0.0
    %166 = vmatprep.subr.mxu0 0.0
    %167 = vmatpush2.msra.mxu0 0.0
    %168 = vmatprep.subr.mxu0 0.0
    %169 = vmatpush2.msra.mxu0 0.0
    %170 = vmatprep.subr.mxu0 0.0
    %171 = vmatpush2.msra.mxu0 0.0
    %172 = vmatprep.subr.mxu0 0.0
    %173 = vmatpush2.msra.mxu0 0.0
    %174 = vmatprep.mubr.f32.mxu0 0.0
    %175 = vmatmul.mubr.f32.gmra.mxu0 %v59
    %v176 = vpop.f32.mrf.mxu0
    %v177 = vadd.f32 %v55, %v176
    %v178 = vpop.f32.mrf.mxu0
    %179 = vmatprep.mubr.f32.mxu0 0.0
    %180 = vmatmul.mubr.f32.gmra.mxu0 %v62
    %v181 = vpop.f32.mrf.mxu0
    %v182 = vadd.f32 %v55, %v181
    %v183 = vpop.f32.mrf.mxu0
    %184 = vmatprep.mubr.f32.mxu0 0.0
    %185 = vmatmul.mubr.f32.gmra.mxu0 %v65
    %v186 = vpop.f32.mrf.mxu0
    %v187 = vadd.f32 %v55, %v186
    %v188 = vpop.f32.mrf.mxu0
    %189 = vmatprep.mubr.f32.mxu0 0.0
    %190 = vmatmul.mubr.f32.gmra.mxu0 %v68
    %v191 = vpop.f32.mrf.mxu0
    %v192 = vadd.f32 %v55, %v191
    %v193 = vpop.f32.mrf.mxu0
    %194 = vmatprep.mubr.f32.mxu0 0.0
    %195 = vmatmul.mubr.f32.gmra.mxu0 %v71
    %v196 = vpop.f32.mrf.mxu0
    %v197 = vadd.f32 %v55, %v196
    %v198 = vpop.f32.mrf.mxu0
    %199 = vmatprep.mubr.f32.mxu0 0.0
    %200 = vmatmul.mubr.f32.gmra.mxu0 %v74
    %v201 = vpop.f32.mrf.mxu0
    %v202 = vadd.f32 %v55, %v201
    %v203 = vpop.f32.mrf.mxu0
    %204 = vmatprep.mubr.f32.mxu0 0.0
    %205 = vmatmul.mubr.f32.gmra.mxu0 %v77
    %v206 = vpop.f32.mrf.mxu0
    %v207 = vadd.f32 %v55, %v206
    %v208 = vpop.f32.mrf.mxu0
    %209 = vmatprep.mubr.f32.mxu0 0.0
    %210 = vmatmul.mubr.f32.gmra.mxu0 %v80
    %v211 = vpop.f32.mrf.mxu0
    %v212 = vadd.f32 %v55, %v211
    %v213 = vpop.f32.mrf.mxu0
    %214 = vmatprep.mubr.f32.mxu0 0.0
    %215 = vmatmul.mubr.f32.gmra.mxu0 %v83
    %v216 = vpop.f32.mrf.mxu0
    %v217 = vadd.f32 %v55, %v216
    %v218 = vpop.f32.mrf.mxu0
    %219 = vmatprep.mubr.f32.mxu0 0.0
    %220 = vmatmul.mubr.f32.gmra.mxu0 %v86
    %v221 = vpop.f32.mrf.mxu0
    %v222 = vadd.f32 %v55, %v221
    %v223 = vpop.f32.mrf.mxu0
    %224 = vmatprep.mubr.f32.mxu0 0.0
    %225 = vmatmul.mubr.f32.gmra.mxu0 %v89
    %v226 = vpop.f32.mrf.mxu0
    %v227 = vadd.f32 %v55, %v226
    %v228 = vpop.f32.mrf.mxu0
    %229 = vmatprep.mubr.f32.mxu0 0.0
    %230 = vmatmul.mubr.f32.gmra.mxu0 %v92
    %v231 = vpop.f32.mrf.mxu0
    %v232 = vadd.f32 %v55, %v231
    %v233 = vpop.f32.mrf.mxu0
    %234 = vmatprep.mubr.f32.mxu0 0.0
    %235 = vmatmul.mubr.f32.gmra.mxu0 %v95
    %v236 = vpop.f32.mrf.mxu0
    %v237 = vadd.f32 %v55, %v236
    %v238 = vpop.f32.mrf.mxu0
    %239 = vmatprep.mubr.f32.mxu0 0.0
    %240 = vmatmul.mubr.f32.gmra.mxu0 %v98
    %v241 = vpop.f32.mrf.mxu0
    %v242 = vadd.f32 %v55, %v241
    %v243 = vpop.f32.mrf.mxu0
    %244 = vmatprep.mubr.f32.mxu0 0.0
    %245 = vmatmul.mubr.f32.gmra.mxu0 %v101
    %v246 = vpop.f32.mrf.mxu0
    %v247 = vadd.f32 %v55, %v246
    %v248 = vpop.f32.mrf.mxu0
    %249 = vmatprep.mubr.f32.mxu0 0.0
    %250 = vmatmul.mubr.f32.gmra.mxu0 %v104
    %v251 = vpop.f32.mrf.mxu0
    %v252 = vadd.f32 %v55, %v251
    %v253 = vpop.f32.mrf.mxu0
    %254 = vdwg.mxu0
    %v255 = vmax.f32 %v177, 0.0
    %v256 = vmax.f32 %v182, 0.0
    %v257 = vmax.f32 %v187, 0.0
    %v258 = vmax.f32 %v192, 0.0
    %v259 = vmax.f32 %v197, 0.0
    %v260 = vmax.f32 %v202, 0.0
    %v261 = vmax.f32 %v207, 0.0
    %v262 = vmax.f32 %v212, 0.0
    %v263 = vmax.f32 %v217, 0.0
    %v264 = vmax.f32 %v222, 0.0
    %v265 = vmax.f32 %v227, 0.0
    %v266 = vmax.f32 %v232, 0.0
    %v267 = vmax.f32 %v237, 0.0
    %v268 = vmax.f32 %v242, 0.0
    %v269 = vmax.f32 %v247, 0.0
    %v270 = vmax.f32 %v252, 0.0
    %v271 = vld [vmem:[%s3] sm:$0xff]
    %v272 = vld [vmem:[%s3 + $0x8] sm:$0xff]
    %v273 = vld [vmem:[%s3 + $0x10] sm:$0xff]
    %v274 = vld [vmem:[%s3 + $0x18] sm:$0x3f]
    %v275 = vld [vmem:[%s4] sm:$0x1]
    %v277 = vlaneseq
    %v278 = vshrl.u32 %v277, 7
    %v279 = vsub.s32 0, %v278
    %v280 = vrot.slane %v275, %v279
    %vm282 = vcmask 244736
    %v284 = vsel %vm282, %v255, 0
    %v287 = vsel %vm282, %v256, 0
    %v290 = vsel %vm282, %v257, 0
    %v293 = vsel %vm282, %v258, 0
    %v296 = vsel %vm282, %v259, 0
    %v299 = vsel %vm282, %v260, 0
    %v302 = vsel %vm282, %v261, 0
    %v305 = vsel %vm282, %v262, 0
    %v308 = vsel %vm282, %v263, 0
    %v311 = vsel %vm282, %v264, 0
    %v314 = vsel %vm282, %v265, 0
    %v317 = vsel %vm282, %v266, 0
    %v320 = vsel %vm282, %v267, 0
    %v323 = vsel %vm282, %v268, 0
    %v326 = vsel %vm282, %v269, 0
    %v329 = vsel %vm282, %v270, 0
    %v332 = vsel %vm106, %v274, 0
    %334 = vmatprep.subr.mxu0 0.0
    %335 = vmatpush1.msra.mxu0 0.0
    %336 = vmatprep.subr.mxu0 0.0
    %337 = vmatpush1.msra.mxu0 0.0
    %338 = vmatprep.subr.mxu0 0.0
    %339 = vmatpush1.msra.mxu0 0.0
    %340 = vmatprep.subr.mxu0 0.0
    %341 = vmatpush1.msra.mxu0 0.0
    %342 = vmatprep.subr.mxu0 0.0
    %343 = vmatpush1.msra.mxu0 0.0
    %344 = vmatprep.subr.mxu0 0.0
    %345 = vmatpush1.msra.mxu0 0.0
    %346 = vmatprep.subr.mxu0 0.0
    %347 = vmatpush1.msra.mxu0 0.0
    %348 = vmatprep.subr.mxu0 0.0
    %349 = vmatpush1.msra.mxu0 0.0
    %350 = vmatprep.subr.mxu0 0.0
    %351 = vmatpush1.msra.mxu0 0.0
    %352 = vmatprep.subr.mxu0 0.0
    %353 = vmatpush1.msra.mxu0 0.0
    %354 = vmatprep.subr.mxu0 0.0
    %355 = vmatpush1.msra.mxu0 0.0
    %356 = vmatprep.subr.mxu0 0.0
    %357 = vmatpush1.msra.mxu0 0.0
    %358 = vmatprep.subr.mxu0 0.0
    %359 = vmatpush1.msra.mxu0 %v332
    %360 = vmatprep.subr.mxu0 0.0
    %361 = vmatpush1.msra.mxu0 %v273
    %362 = vmatprep.subr.mxu0 0.0
    %363 = vmatpush1.msra.mxu0 %v272
    %364 = vmatprep.subr.mxu0 0.0
    %365 = vmatpush1.msra.mxu0 %v271
    %366 = vmatprep.subr.mxu0 0.0
    %367 = vmatpush2.msra.mxu0 0.0
    %368 = vmatprep.subr.mxu0 0.0
    %369 = vmatpush2.msra.mxu0 0.0
    %370 = vmatprep.subr.mxu0 0.0
    %371 = vmatpush2.msra.mxu0 0.0
    %372 = vmatprep.subr.mxu0 0.0
    %373 = vmatpush2.msra.mxu0 0.0
    %374 = vmatprep.subr.mxu0 0.0
    %375 = vmatpush2.msra.mxu0 0.0
    %376 = vmatprep.subr.mxu0 0.0
    %377 = vmatpush2.msra.mxu0 0.0
    %378 = vmatprep.subr.mxu0 0.0
    %379 = vmatpush2.msra.mxu0 0.0
    %380 = vmatprep.subr.mxu0 0.0
    %381 = vmatpush2.msra.mxu0 0.0
    %382 = vmatprep.subr.mxu0 0.0
    %383 = vmatpush2.msra.mxu0 0.0
    %384 = vmatprep.subr.mxu0 0.0
    %385 = vmatpush2.msra.mxu0 0.0
    %386 = vmatprep.subr.mxu0 0.0
    %387 = vmatpush2.msra.mxu0 0.0
    %388 = vmatprep.subr.mxu0 0.0
    %389 = vmatpush2.msra.mxu0 0.0
    %390 = vmatprep.subr.mxu0 0.0
    %391 = vmatpush2.msra.mxu0 0.0
    %392 = vmatprep.subr.mxu0 0.0
    %393 = vmatpush2.msra.mxu0 0.0
    %394 = vmatprep.subr.mxu0 0.0
    %395 = vmatpush2.msra.mxu0 0.0
    %396 = vmatprep.subr.mxu0 0.0
    %397 = vmatpush2.msra.mxu0 0.0
    %398 = vmatprep.mubr.f32.mxu0 0.0
    %399 = vmatmul.mubr.f32.gmra.mxu0 %v284
    %v400 = vpop.f32.mrf.mxu0
    %v401 = vadd.f32 %v280, %v400
    %v402 = vpop.f32.mrf.mxu0
    %403 = vmatprep.mubr.f32.mxu0 0.0
    %404 = vmatmul.mubr.f32.gmra.mxu0 %v287
    %v405 = vpop.f32.mrf.mxu0
    %v406 = vadd.f32 %v280, %v405
    %v407 = vpop.f32.mrf.mxu0
    %408 = vmatprep.mubr.f32.mxu0 0.0
    %409 = vmatmul.mubr.f32.gmra.mxu0 %v290
    %v410 = vpop.f32.mrf.mxu0
    %v411 = vadd.f32 %v280, %v410
    %v412 = vpop.f32.mrf.mxu0
    %413 = vmatprep.mubr.f32.mxu0 0.0
    %414 = vmatmul.mubr.f32.gmra.mxu0 %v293
    %v415 = vpop.f32.mrf.mxu0
    %v416 = vadd.f32 %v280, %v415
    %v417 = vpop.f32.mrf.mxu0
    %418 = vmatprep.mubr.f32.mxu0 0.0
    %419 = vmatmul.mubr.f32.gmra.mxu0 %v296
    %v420 = vpop.f32.mrf.mxu0
    %v421 = vadd.f32 %v280, %v420
    %v422 = vpop.f32.mrf.mxu0
    %423 = vmatprep.mubr.f32.mxu0 0.0
    %424 = vmatmul.mubr.f32.gmra.mxu0 %v299
    %v425 = vpop.f32.mrf.mxu0
    %v426 = vadd.f32 %v280, %v425
    %v427 = vpop.f32.mrf.mxu0
    %428 = vmatprep.mubr.f32.mxu0 0.0
    %429 = vmatmul.mubr.f32.gmra.mxu0 %v302
    %v430 = vpop.f32.mrf.mxu0
    %v431 = vadd.f32 %v280, %v430
    %v432 = vpop.f32.mrf.mxu0
    %433 = vmatprep.mubr.f32.mxu0 0.0
    %434 = vmatmul.mubr.f32.gmra.mxu0 %v305
    %v435 = vpop.f32.mrf.mxu0
    %v436 = vadd.f32 %v280, %v435
    %v437 = vpop.f32.mrf.mxu0
    %438 = vmatprep.mubr.f32.mxu0 0.0
    %439 = vmatmul.mubr.f32.gmra.mxu0 %v308
    %v440 = vpop.f32.mrf.mxu0
    %v441 = vadd.f32 %v280, %v440
    %v442 = vpop.f32.mrf.mxu0
    %443 = vmatprep.mubr.f32.mxu0 0.0
    %444 = vmatmul.mubr.f32.gmra.mxu0 %v311
    %v445 = vpop.f32.mrf.mxu0
    %v446 = vadd.f32 %v280, %v445
    %v447 = vpop.f32.mrf.mxu0
    %448 = vmatprep.mubr.f32.mxu0 0.0
    %449 = vmatmul.mubr.f32.gmra.mxu0 %v314
    %v450 = vpop.f32.mrf.mxu0
    %v451 = vadd.f32 %v280, %v450
    %v452 = vpop.f32.mrf.mxu0
    %453 = vmatprep.mubr.f32.mxu0 0.0
    %454 = vmatmul.mubr.f32.gmra.mxu0 %v317
    %v455 = vpop.f32.mrf.mxu0
    %v456 = vadd.f32 %v280, %v455
    %v457 = vpop.f32.mrf.mxu0
    %458 = vmatprep.mubr.f32.mxu0 0.0
    %459 = vmatmul.mubr.f32.gmra.mxu0 %v320
    %v460 = vpop.f32.mrf.mxu0
    %v461 = vadd.f32 %v280, %v460
    %v462 = vpop.f32.mrf.mxu0
    %463 = vmatprep.mubr.f32.mxu0 0.0
    %464 = vmatmul.mubr.f32.gmra.mxu0 %v323
    %v465 = vpop.f32.mrf.mxu0
    %v466 = vadd.f32 %v280, %v465
    %v467 = vpop.f32.mrf.mxu0
    %468 = vmatprep.mubr.f32.mxu0 0.0
    %469 = vmatmul.mubr.f32.gmra.mxu0 %v326
    %v470 = vpop.f32.mrf.mxu0
    %v471 = vadd.f32 %v280, %v470
    %v472 = vpop.f32.mrf.mxu0
    %473 = vmatprep.mubr.f32.mxu0 0.0
    %474 = vmatmul.mubr.f32.gmra.mxu0 %v329
    %v475 = vpop.f32.mrf.mxu0
    %v476 = vadd.f32 %v280, %v475
    %v477 = vpop.f32.mrf.mxu0
    %478 = vdwg.mxu0
    %v479 = vmax.f32 %v401, 0.0
    %v480 = vmax.f32 %v406, 0.0
    %v481 = vmax.f32 %v411, 0.0
    %v482 = vmax.f32 %v416, 0.0
    %v483 = vmax.f32 %v421, 0.0
    %v484 = vmax.f32 %v426, 0.0
    %v485 = vmax.f32 %v431, 0.0
    %v486 = vmax.f32 %v436, 0.0
    %v487 = vmax.f32 %v441, 0.0
    %v488 = vmax.f32 %v446, 0.0
    %v489 = vmax.f32 %v451, 0.0
    %v490 = vmax.f32 %v456, 0.0
    %v491 = vmax.f32 %v461, 0.0
    %v492 = vmax.f32 %v466, 0.0
    %v493 = vmax.f32 %v471, 0.0
    %v494 = vmax.f32 %v476, 0.0
    %v495 = vld [vmem:[%s5] sm:$0x1]
    %v496 = vld [vmem:[#allocation2] sm:$0x1]
    %498 = vset.pattern.permute.xlu0 0
    %499 = vperm.xlu0 %498, %v496
    %v500 = vpop.permute.xlu0 %499
    %v502 = vlaneseq
    %v503 = vshrl.u32 %v502, 7
    %v504 = vsub.s32 0, %v503
    %v505 = vrot.slane %v500, %v504
    %vm506 = vcmask 162816
    %v508 = vsel %vm506, %v495, 0
    %v511 = vsel %vm506, %v479, 0
    %v514 = vsel %vm506, %v480, 0
    %v517 = vsel %vm506, %v481, 0
    %v520 = vsel %vm506, %v482, 0
    %v523 = vsel %vm506, %v483, 0
    %v526 = vsel %vm506, %v484, 0
    %v529 = vsel %vm506, %v485, 0
    %v532 = vsel %vm506, %v486, 0
    %v535 = vsel %vm506, %v487, 0
    %v538 = vsel %vm506, %v488, 0
    %v541 = vsel %vm506, %v489, 0
    %v544 = vsel %vm506, %v490, 0
    %v547 = vsel %vm506, %v491, 0
    %v550 = vsel %vm506, %v492, 0
    %v553 = vsel %vm506, %v493, 0
    %v556 = vsel %vm506, %v494, 0
    %558 = vmatprep.subr.mxu0 0.0
    %559 = vmatpush1.xpose.msra.mxu0 %v556
    %560 = vmatprep.subr.mxu0 0.0
    %561 = vmatpush1.xpose.msra.mxu0 %v553
    %562 = vmatprep.subr.mxu0 0.0
    %563 = vmatpush1.xpose.msra.mxu0 %v550
    %564 = vmatprep.subr.mxu0 0.0
    %565 = vmatpush1.xpose.msra.mxu0 %v547
    %566 = vmatprep.subr.mxu0 0.0
    %567 = vmatpush1.xpose.msra.mxu0 %v544
    %568 = vmatprep.subr.mxu0 0.0
    %569 = vmatpush1.xpose.msra.mxu0 %v541
    %570 = vmatprep.subr.mxu0 0.0
    %571 = vmatpush1.xpose.msra.mxu0 %v538
    %572 = vmatprep.subr.mxu0 0.0
    %573 = vmatpush1.xpose.msra.mxu0 %v535
    %574 = vmatprep.subr.mxu0 0.0
    %575 = vmatpush1.xpose.msra.mxu0 %v532
    %576 = vmatprep.subr.mxu0 0.0
    %577 = vmatpush1.xpose.msra.mxu0 %v529
    %578 = vmatprep.subr.mxu0 0.0
    %579 = vmatpush1.xpose.msra.mxu0 %v526
    %580 = vmatprep.subr.mxu0 0.0
    %581 = vmatpush1.xpose.msra.mxu0 %v523
    %582 = vmatprep.subr.mxu0 0.0
    %583 = vmatpush1.xpose.msra.mxu0 %v520
    %584 = vmatprep.subr.mxu0 0.0
    %585 = vmatpush1.xpose.msra.mxu0 %v517
    %586 = vmatprep.subr.mxu0 0.0
    %587 = vmatpush1.xpose.msra.mxu0 %v514
    %588 = vmatprep.subr.mxu0 0.0
    %589 = vmatpush1.xpose.msra.mxu0 %v511
    %590 = vmatprep.subr.mxu0 0.0
    %591 = vmatpush2.xpose.msra.mxu0 0.0
    %592 = vmatprep.subr.mxu0 0.0
    %593 = vmatpush2.xpose.msra.mxu0 0.0
    %594 = vmatprep.subr.mxu0 0.0
    %595 = vmatpush2.xpose.msra.mxu0 0.0
    %596 = vmatprep.subr.mxu0 0.0
    %597 = vmatpush2.xpose.msra.mxu0 0.0
    %598 = vmatprep.subr.mxu0 0.0
    %599 = vmatpush2.xpose.msra.mxu0 0.0
    %600 = vmatprep.subr.mxu0 0.0
    %601 = vmatpush2.xpose.msra.mxu0 0.0
    %602 = vmatprep.subr.mxu0 0.0
    %603 = vmatpush2.xpose.msra.mxu0 0.0
    %604 = vmatprep.subr.mxu0 0.0
    %605 = vmatpush2.xpose.msra.mxu0 0.0
    %606 = vmatprep.subr.mxu0 0.0
    %607 = vmatpush2.xpose.msra.mxu0 0.0
    %608 = vmatprep.subr.mxu0 0.0
    %609 = vmatpush2.xpose.msra.mxu0 0.0
    %610 = vmatprep.subr.mxu0 0.0
    %611 = vmatpush2.xpose.msra.mxu0 0.0
    %612 = vmatprep.subr.mxu0 0.0
    %613 = vmatpush2.xpose.msra.mxu0 0.0
    %614 = vmatprep.subr.mxu0 0.0
    %615 = vmatpush2.xpose.msra.mxu0 0.0
    %616 = vmatprep.subr.mxu0 0.0
    %617 = vmatpush2.xpose.msra.mxu0 0.0
    %618 = vmatprep.subr.mxu0 0.0
    %619 = vmatpush2.xpose.msra.mxu0 0.0
    %620 = vmatprep.subr.mxu0 0.0
    %621 = vmatpush2.xpose.msra.mxu0 0.0
    %622 = vmatprep.mubr.f32.mxu0 0.0
    %623 = vmatmul.mubr.f32.gmra.mxu0 %v508
    %v624 = vpop.f32.mrf.mxu0
    %v625 = vadd.f32 %v505, %v624
    %v626 = vpop.f32.mrf.mxu0
    %627 = vdwg.mxu0
    %v628 = vand.u32 2147483647, %v625
    %v629 = vsub.f32 0.0, %v628
    %v630 = vmul.f32 %v629, 1.442695
    %v631 = vpow.pop %v630
    %vm632 = vcmp.ge.f32.partialorder %v625, 0.0
    %v633 = vadd.f32 %v631, 1.0
    %v634 = vrcp.pop %v633
    %v635 = vmul.f32 1.0, %v634
    %v636 = vmul.f32 %v631, %v634
    %v637 = vsel %vm632, %v635, %v636
    %638 = vst [vmem:[#allocation3] sm:$0x1] %v637
    // Predicated region
    $region30: #{tpu_custom_call.1} parent=1 // pred_check
      _
    $region31: #{tpu_custom_call.1} parent=1 // pred_check_branch
      %640 = sbr.rel (0) target = $region33
    $region32: #{tpu_custom_call.1} parent=1 // pred_region
      %s642 = ssub.s32 16, 16
      %643 = vsyncadd [#allocation4], %s642
      %s645 = sshll.u32 [#allocation3], 4
      %s646 = int_to_ptr.vmem [resolvable:$true] %s645
      %648 = dma.vmem_to_hbm [thread:$0]  %s646, 16, %s7, [#allocation4]
    $region33: #{tpu_custom_call.1} parent=1 // pred_fallthru
      _
    // Predicated region
    $region34: #{tpu_custom_call.1} parent=1 // pred_check
      _
    $region35: #{tpu_custom_call.1} parent=1 // pred_check_branch
      %650 = sbr.rel (0) target = $region37
    $region36: #{tpu_custom_call.1} parent=1 // pred_region
      %651 = dma.done [#allocation4], 16
    $region37: #{tpu_custom_call.1} parent=1 // pred_fallthru
      _
    %652 = vsyncpa [#allocation4], 1

</llo_original>
